<compile_context>
chip_gen: v5e
topology: v5e:2x2
jax: 0.10.0
libtpu: 0.0.40
codegen_flags: <defaults>
</compile_context>

<pallas_src>
import functools

import jax
import jax.numpy as jnp
from jax.experimental import pallas as pl
from jax.experimental.pallas import tpu as pltpu

# Finite stand-in for -inf: exp(_NEG_INF - m) underflows to exactly 0, no NaN risk.
_NEG_INF = -1e30


def _round_up(x, m):
    return ((x + m - 1) // m) * m


def _cdiv(a, b):
    return (a + b - 1) // b


def _attention_kernel(x_ref, w_ref, o_ref, m_sc, l_sc, acc_sc, *, t_valid, t_block):
    """Process one (TB, TT, Dp) slab; online softmax over the time axis.

    x_ref : (TB, TT, Dp)  input slab, native dtype (bf16/f32)
    w_ref : (1, Dp)       attention weight row, f32 (bias dropped: shift-invariant)
    o_ref : (TB, Dp)      pooled output slab (written on the last time step)
    m_sc  : (TB, 1)  f32  running max
    l_sc  : (TB, 1)  f32  running softmax denominator
    acc_sc: (TB, Dp) f32  running weighted sum
    """
    ti = pl.program_id(1)

    @pl.when(ti == 0)
    def _():
        m_sc[...] = jnp.full_like(m_sc, _NEG_INF)
        l_sc[...] = jnp.zeros_like(l_sc)
        acc_sc[...] = jnp.zeros_like(acc_sc)

    x = x_ref[...]                                    # native dtype; no f32 slab copy
    w = w_ref[...]                                    # (1, Dp) f32

    # Scores on the VPU: mixed-dtype multiply promotes per-vreg to f32,
    # lane (feature) reduce -> (TB, TT) f32.  Bias omitted (softmax-invariant).
    s = jnp.sum(x * w[None, :, :], axis=-1)

    # Mask padded time positions (only the last time block can contain padding).
    if t_valid % t_block != 0:
        tpos = ti * t_block + jax.lax.broadcasted_iota(jnp.int32, s.shape, 1)
        s = jnp.where(tpos < t_valid, s, _NEG_INF)

    # Online softmax update over the time axis (PyTorch softmax dim=1).
    m_prev = m_sc[...]                                # (TB, 1)
    m_new = jnp.maximum(m_prev, jnp.max(s, axis=-1, keepdims=True))
    alpha = jnp.exp(m_prev - m_new)                   # (TB, 1)
    p = jnp.exp(s - m_new)                            # (TB, TT) f32
    l_sc[...] = alpha * l_sc[...] + jnp.sum(p, axis=-1, keepdims=True)
    # Weighted partial sum over time; x promotes to f32 per-vreg, f32 accumulation.
    acc_sc[...] = alpha * acc_sc[...] + jnp.sum(x * p[:, :, None], axis=1)
    m_sc[...] = m_new

    @pl.when(ti == pl.num_programs(1) - 1)
    def _():
        o_ref[...] = (acc_sc[...] / l_sc[...]).astype(o_ref.dtype)


def _choose_tiles(B, T, Dp, itemsize, target_bytes):
    """Pick (block_b, block_t): biggest tiles within ~target_bytes per input buffer."""
    row_bytes = T * Dp * itemsize                     # one batch row, full sequence
    if 8 * row_bytes <= target_bytes:
        # Whole sequence per block; grow the batch dimension.
        block_t = T
        block_b = (target_bytes // row_bytes) // 8 * 8
        block_b = max(8, min(block_b, 2048, _round_up(B, 8)))
        if B > 8:
            nb = _cdiv(B, block_b)
            if nb < 2:                                # give both v7x TCs work
                block_b = max(8, _round_up(_cdiv(B, 2), 8))
                nb = _cdiv(B, block_b)
            if nb > 1 and nb % 2 == 1:                # prefer an even step count
                cand = max(8, _round_up(_cdiv(B, nb + 1), 8))
                if _cdiv(B, cand) % 2 == 0:
                    block_b = cand
    else:
        # Long sequences: minimum batch slab, tile over time (online softmax).
        block_b = 8
        block_t = (target_bytes // (8 * Dp * itemsize)) // 8 * 8
        block_t = max(8, min(block_t, _round_up(T, 8)))
    return block_b, block_t


def attention_forward(lstm_output, attn_weight, attn_bias=None, *,
                      block_b=None, block_t=None,
                      target_tile_bytes=4 * 1024 * 1024,
                      vmem_limit_bytes=48 * 1024 * 1024):
    """lstm_output: (B, T, D); attn_weight: (1, D); attn_bias: (1,) -> (B, D).

    attn_bias is accepted for API parity with nn.Linear but is not needed:
    softmax over the time axis is invariant to a constant shift of the scores.
    """
    B, T, D = lstm_output.shape
    itemsize = jnp.dtype(lstm_output.dtype).itemsize

    # Lane-dense feature axis: pad D to a multiple of 128.  Zero-padded features
    # contribute 0 to the scores and 0 to the pooled sum, so results are exact.
    Dp = _round_up(D, 128)

    tb_auto, tt_auto = _choose_tiles(B, T, Dp, itemsize, target_tile_bytes)
    if block_b is None:
        block_b = tb_auto
    if block_t is None:
        block_t = tt_auto
    block_b = max(8, (block_b // 8) * 8)
    block_t = T if block_t >= T else max(8, (block_t // 8) * 8)

    Bp = _round_up(B, block_b)
    Tp = _round_up(T, block_t)

    x = lstm_output
    if (Bp, Tp, Dp) != (B, T, D):
        x = jnp.pad(x, ((0, Bp - B), (0, Tp - T), (0, Dp - D)))

    w = attn_weight.reshape(1, D).astype(jnp.float32)   # lane-dense f32 weight row
    if Dp != D:
        w = jnp.pad(w, ((0, 0), (0, Dp - D)))

    grid = (Bp // block_b, Tp // block_t)
    kernel = functools.partial(_attention_kernel, t_valid=T, t_block=block_t)

    cost = pl.CostEstimate(
        flops=4 * B * T * D,                # scores + weighted sum (mul + add each)
        transcendentals=B * T,              # exp per (batch, time) score
        bytes_accessed=B * T * D * itemsize + B * D * itemsize,
    )

    out = pl.pallas_call(
        kernel,
        out_shape=jax.ShapeDtypeStruct((Bp, Dp), lstm_output.dtype),
        grid_spec=pltpu.PrefetchScalarGridSpec(
            num_scalar_prefetch=0,
            grid=grid,
            in_specs=[
                pl.BlockSpec((block_b, block_t, Dp), lambda i, t: (i, t, 0)),
                pl.BlockSpec((1, Dp), lambda i, t: (0, 0)),
            ],
            out_specs=pl.BlockSpec((block_b, Dp), lambda i, t: (i, 0)),
            scratch_shapes=[
                pltpu.VMEM((block_b, 1), jnp.float32),    # running max
                pltpu.VMEM((block_b, 1), jnp.float32),    # running denom
                pltpu.VMEM((block_b, Dp), jnp.float32),   # running weighted sum
            ],
        ),
        compiler_params=pltpu.CompilerParams(
            dimension_semantics=("parallel", "arbitrary"),
            vmem_limit_bytes=vmem_limit_bytes,
        ),
        cost_estimate=cost,
    )(x, w)
    return out[:B, :D]


def attention_reference(lstm_output, attn_weight, attn_bias):
    # Pure-JAX reference mirroring the PyTorch forward (bias included).
    scores = jnp.einsum("btd,od->bto", lstm_output, attn_weight) + attn_bias  # (B,T,1)
    weights = jax.nn.softmax(scores, axis=1)
    return jnp.sum(lstm_output * weights, axis=1)


if __name__ == "__main__":
    key = jax.random.PRNGKey(0)
    k1, k2, k3, k4 = jax.random.split(key, 4)

    # Shapes implied by the module: BiLSTM output (B, T, 2 * hidden_dim).
    B, T, hidden_dim = 2, 8, 32
    D = 2 * hidden_dim

    lstm_output = jax.random.normal(k1, (B, T, D), dtype=jnp.float32)
    # nn.Linear(hidden_dim * 2, 1): weight (1, D), bias (1,) — deterministic init
    attn_weight = (jax.random.uniform(k2, (1, D), dtype=jnp.float32) - 0.5) * (2.0 / jnp.sqrt(D))
    attn_bias = (jax.random.uniform(k3, (1,), dtype=jnp.float32) - 0.5) * (2.0 / jnp.sqrt(D))

    out = attention_forward(lstm_output, attn_weight, attn_bias)
    jax.block_until_ready(out)
    ref = attention_reference(lstm_output, attn_weight, attn_bias)
    assert out.shape == (B, D)
    assert jnp.allclose(out, ref, atol=1e-5, rtol=1e-5), "mismatch vs reference"

    # Exercise the time-tiled online-softmax path (multiple time blocks + masking
    # of a non-multiple-of-8 sequence length) with a small forced block_t.
    B2, T2 = 4, 20
    x2 = jax.random.normal(k4, (B2, T2, D), dtype=jnp.float32)
    out2 = attention_forward(x2, attn_weight, attn_bias, block_t=8)
    jax.block_until_ready(out2)
    ref2 = attention_reference(x2, attn_weight, attn_bias)
    assert out2.shape == (B2, D)
    assert jnp.allclose(out2, ref2, atol=1e-5, rtol=1e-5), "mismatch vs reference (tiled T)"

    print("KERNEL_OK")
</pallas_src>

<mosaic_0001>
module attributes {stable_mosaic.version = 11 : i64} {
  func.func @_attention_kernel(%arg0: i32, %arg1: i32, %arg2: memref<8x8x128xf32, #tpu.memory_space<vmem>>, %arg3: memref<1x128xf32, #tpu.memory_space<vmem>>, %arg4: memref<8x128xf32, #tpu.memory_space<vmem>>, %arg5: memref<8x1xf32, #tpu.memory_space<vmem>>, %arg6: memref<8x1xf32, #tpu.memory_space<vmem>>, %arg7: memref<8x128xf32, #tpu.memory_space<vmem>>) attributes {dimension_semantics = [#tpu.dimension_semantics<parallel>, #tpu.dimension_semantics<arbitrary>], iteration_bounds = array<i64: 1, 1>, scalar_prefetch = 0 : i64, scratch_operands = 3 : i64, tpu.core_type = #tpu.core_type<tc>, window_params = [{transform_indices = @transform_0, window_bounds = array<i64: 8, 8, 128>}, {pipeline_mode = #tpu.pipeline_mode<synchronous>, transform_indices = @transform_1, window_bounds = array<i64: 1, 128>}, {transform_indices = @transform_2, window_bounds = array<i64: 8, 128>}]} {
    %c0_i32 = arith.constant 0 : i32
    %0 = arith.cmpi eq, %arg1, %c0_i32 : i32
    %1 = arith.extui %0 : i1 to i32
    %c0_i32_0 = arith.constant 0 : i32
    %2 = arith.cmpi ne, %1, %c0_i32_0 : i32
    scf.if %2 {
      %cst_22 = arith.constant -1.000000e+30 : f32
      %37 = vector.broadcast %cst_22 : f32 to vector<8x1xf32>
      %c0_23 = arith.constant 0 : index
      %c0_24 = arith.constant 0 : index
      %38 = vector.load %arg5[%c0_23, %c0_24] : memref<8x1xf32, #tpu.memory_space<vmem>>, vector<8x1xf32>
      tpu.vector_store %arg5[%c0_23, %c0_24], %37 {strides = array<i32>} : memref<8x1xf32, #tpu.memory_space<vmem>>, vector<8x1xf32>,
      %cst_25 = arith.constant 0.000000e+00 : f32
      %39 = vector.broadcast %cst_25 : f32 to vector<8x1xf32>
      %c0_26 = arith.constant 0 : index
      %c0_27 = arith.constant 0 : index
      %40 = vector.load %arg6[%c0_26, %c0_27] : memref<8x1xf32, #tpu.memory_space<vmem>>, vector<8x1xf32>
      tpu.vector_store %arg6[%c0_26, %c0_27], %39 {strides = array<i32>} : memref<8x1xf32, #tpu.memory_space<vmem>>, vector<8x1xf32>,
      %cst_28 = arith.constant 0.000000e+00 : f32
      %41 = vector.broadcast %cst_28 : f32 to vector<8x128xf32>
      %c0_29 = arith.constant 0 : index
      %c0_30 = arith.constant 0 : index
      %42 = vector.load %arg7[%c0_29, %c0_30] : memref<8x128xf32, #tpu.memory_space<vmem>>, vector<8x128xf32>
      tpu.vector_store %arg7[%c0_29, %c0_30], %41 {strides = array<i32>} : memref<8x128xf32, #tpu.memory_space<vmem>>, vector<8x128xf32>,
    } else {
    }
    %c0 = arith.constant 0 : index
    %c0_1 = arith.constant 0 : index
    %c0_2 = arith.constant 0 : index
    %3 = vector.load %arg2[%c0, %c0_1, %c0_2] : memref<8x8x128xf32, #tpu.memory_space<vmem>>, vector<8x8x128xf32>
    %c0_3 = arith.constant 0 : index
    %c0_4 = arith.constant 0 : index
    %4 = vector.load %arg3[%c0_3, %c0_4] : memref<1x128xf32, #tpu.memory_space<vmem>>, vector<1x128xf32>
    %5 = vector.shape_cast %4 : vector<1x128xf32> to vector<1x1x128xf32>
    %6 = vector.broadcast %5 : vector<1x1x128xf32> to vector<8x8x128xf32>
    %7 = arith.mulf %3, %6 : vector<8x8x128xf32>
    %cst = arith.constant dense<0.000000e+00> : vector<8x8xf32>
    %8 = vector.multi_reduction <add>, %7, %cst [2] : vector<8x8x128xf32> to vector<8x8xf32>
    %c0_5 = arith.constant 0 : index
    %c0_6 = arith.constant 0 : index
    %9 = vector.load %arg5[%c0_5, %c0_6] : memref<8x1xf32, #tpu.memory_space<vmem>>, vector<8x1xf32>
    %cst_7 = arith.constant dense<0xFF800000> : vector<8xf32>
    %10 = vector.multi_reduction <maximumf>, %8, %cst_7 [1] : vector<8x8xf32> to vector<8xf32>
    %11 = vector.shape_cast %10 : vector<8xf32> to vector<8x1xf32>
    %12 = arith.maximumf %9, %11 : vector<8x1xf32>
    %13 = arith.subf %9, %12 : vector<8x1xf32>
    %14 = math.exp %13 : vector<8x1xf32>
    %15 = vector.broadcast %12 : vector<8x1xf32> to vector<8x8xf32>
    %16 = arith.subf %8, %15 : vector<8x8xf32>
    %17 = math.exp %16 : vector<8x8xf32>
    %c0_8 = arith.constant 0 : index
    %c0_9 = arith.constant 0 : index
    %18 = vector.load %arg6[%c0_8, %c0_9] : memref<8x1xf32, #tpu.memory_space<vmem>>, vector<8x1xf32>
    %19 = arith.mulf %14, %18 : vector<8x1xf32>
    %cst_10 = arith.constant dense<0.000000e+00> : vector<8xf32>
    %20 = vector.multi_reduction <add>, %17, %cst_10 [1] : vector<8x8xf32> to vector<8xf32>
    %21 = vector.shape_cast %20 : vector<8xf32> to vector<8x1xf32>
    %22 = arith.addf %19, %21 : vector<8x1xf32>
    %c0_11 = arith.constant 0 : index
    %c0_12 = arith.constant 0 : index
    %23 = vector.load %arg6[%c0_11, %c0_12] : memref<8x1xf32, #tpu.memory_space<vmem>>, vector<8x1xf32>
    tpu.vector_store %arg6[%c0_11, %c0_12], %22 {strides = array<i32>} : memref<8x1xf32, #tpu.memory_space<vmem>>, vector<8x1xf32>,
    %c0_13 = arith.constant 0 : index
    %c0_14 = arith.constant 0 : index
    %24 = vector.load %arg7[%c0_13, %c0_14] : memref<8x128xf32, #tpu.memory_space<vmem>>, vector<8x128xf32>
    %25 = vector.broadcast %14 : vector<8x1xf32> to vector<8x128xf32>
    %26 = arith.mulf %25, %24 : vector<8x128xf32>
    %27 = vector.shape_cast %17 : vector<8x8xf32> to vector<8x8x1xf32>
    %28 = vector.broadcast %27 : vector<8x8x1xf32> to vector<8x8x128xf32>
    %29 = arith.mulf %3, %28 : vector<8x8x128xf32>
    %cst_15 = arith.constant dense<0.000000e+00> : vector<8x128xf32>
    %30 = vector.multi_reduction <add>, %29, %cst_15 [1] : vector<8x8x128xf32> to vector<8x128xf32>
    %31 = arith.addf %26, %30 : vector<8x128xf32>
    %c0_16 = arith.constant 0 : index
    %c0_17 = arith.constant 0 : index
    %32 = vector.load %arg7[%c0_16, %c0_17] : memref<8x128xf32, #tpu.memory_space<vmem>>, vector<8x128xf32>
    tpu.vector_store %arg7[%c0_16, %c0_17], %31 {strides = array<i32>} : memref<8x128xf32, #tpu.memory_space<vmem>>, vector<8x128xf32>,
    %c0_18 = arith.constant 0 : index
    %c0_19 = arith.constant 0 : index
    %33 = vector.load %arg5[%c0_18, %c0_19] : memref<8x1xf32, #tpu.memory_space<vmem>>, vector<8x1xf32>
    tpu.vector_store %arg5[%c0_18, %c0_19], %12 {strides = array<i32>} : memref<8x1xf32, #tpu.memory_space<vmem>>, vector<8x1xf32>,
    %c0_i32_20 = arith.constant 0 : i32
    %34 = arith.cmpi eq, %arg1, %c0_i32_20 : i32
    %35 = arith.extui %34 : i1 to i32
    %c0_i32_21 = arith.constant 0 : i32
    %36 = arith.cmpi ne, %35, %c0_i32_21 : i32
    scf.if %36 {
      %c0_22 = arith.constant 0 : index
      %c0_23 = arith.constant 0 : index
      %37 = vector.load %arg7[%c0_22, %c0_23] : memref<8x128xf32, #tpu.memory_space<vmem>>, vector<8x128xf32>
      %c0_24 = arith.constant 0 : index
      %c0_25 = arith.constant 0 : index
      %38 = vector.load %arg6[%c0_24, %c0_25] : memref<8x1xf32, #tpu.memory_space<vmem>>, vector<8x1xf32>
      %39 = vector.broadcast %38 : vector<8x1xf32> to vector<8x128xf32>
      %40 = arith.divf %37, %39 : vector<8x128xf32>
      %c0_26 = arith.constant 0 : index
      %c0_27 = arith.constant 0 : index
      %41 = vector.load %arg4[%c0_26, %c0_27] : memref<8x128xf32, #tpu.memory_space<vmem>>, vector<8x128xf32>
      tpu.vector_store %arg4[%c0_26, %c0_27], %40 {strides = array<i32>} : memref<8x128xf32, #tpu.memory_space<vmem>>, vector<8x128xf32>,
    } else {
    }
    return
  }
  func.func @transform_0(%arg0: i32, %arg1: i32) -> (i32, i32, i32) {
    %c0_i32 = arith.constant 0 : i32
    %c0_i32_0 = arith.constant 0 : i32
    return %arg0, %arg1, %c0_i32 : i32, i32, i32
  }
  func.func @transform_1(%arg0: i32, %arg1: i32) -> (i32, i32) {
    %c0_i32 = arith.constant 0 : i32
    %c0_i32_0 = arith.constant 0 : i32
    %c0_i32_1 = arith.constant 0 : i32
    return %c0_i32, %c0_i32_0 : i32, i32
  }
  func.func @transform_2(%arg0: i32, %arg1: i32) -> (i32, i32) {
    %c0_i32 = arith.constant 0 : i32
    %c0_i32_0 = arith.constant 0 : i32
    return %arg0, %c0_i32 : i32, i32
  }
}

</mosaic_0001>

<llo_original>
// kernel: tpu_custom_call.1
$region0: #{tpu_custom_call.1}
  #allocation0 [shape = 'u32[]', space=smem, size = 0x4, offset = 0x4, fixed_abs, tag = 'smem constant byte address 0x4 - core index']
  #allocation1 [shape = 'u32[72,128]{1,0:T(1,128)}', space=vmem, size = 0x9000, scoped, tag = 'internal scratch']
  #allocation2 [shape = 'f32[8,1]{1,0:T(8,128)}', space=vmem, size = 0x1000, scoped, tag = 'scratch operand']
  #allocation3 [shape = 'f32[8,1]{1,0:T(8,128)}', space=vmem, size = 0x1000, scoped, tag = 'scratch operand']
  #allocation4 [shape = 'f32[8,128]{1,0:T(8,128)}', space=vmem, size = 0x1000, scoped, tag = 'scratch operand']
  %s0 = inlined_call_operand.hbm [shape: f32[8,8,128], index: 0, kind: input, shape index: {}]
  %s1 = inlined_call_operand.hbm [shape: f32[1,128], index: 1, kind: input, shape index: {}]
  %s2 = inlined_call_operand.hbm [shape: f32[8,128], index: 2, kind: output, shape index: {}]
  %s3 = sld [smem:[#allocation0]]
  $region34: #{tpu_custom_call.1} parent=0
    _
  %s5 = ssub.s32 1, %s3
  %s6 = scalar_select 0, %s5, %s3
  $region1: #{tpu_custom_call.1} parent=0
    #allocation5 [shape = 'u8[32768]{0}', space=vmem, size = 0x8000, scoped, tag = 'input window, operand 0, single buffered']
    #allocation6 [shape = 's32[1]{0}', space=sflag, size = 0x4, scoped, tag = 'scoped memory for tpu_custom_call.1']
    #allocation7 [shape = 's32[1]{0}', space=sflag, size = 0x4, scoped, tag = 'scoped memory for tpu_custom_call.1']
    #allocation8 [shape = 'u8[512]{0}', space=vmem, size = 0x400, scoped, tag = 'input window, operand 1, single buffered']
    #allocation9 [shape = 's32[1]{0}', space=sflag, size = 0x4, scoped, tag = 'scoped memory for tpu_custom_call.1']
    #allocation10 [shape = 'u8[4096]{0}', space=vmem, size = 0x1000, scoped, tag = 'output window, operand 0, single buffered']
    %7 = vsyncpa [#allocation6], 0
    %8 = vsyncpa [#allocation9], 0
    %9 = vsyncpa [#allocation7], 0
    // Predicated region
    $region2: #{tpu_custom_call.1} parent=1 // pred_check
      _
    $region3: #{tpu_custom_call.1} parent=1 // pred_check_branch
      %11 = sbr.rel (0) target = $region5
    $region4: #{tpu_custom_call.1} parent=1 // pred_region
      %13 = vsyncadd [#allocation6], 0
      %s14 = sshll.u32 %s0, 4
      %s15 = int_to_ptr.hbm [resolvable:$true] %s14
      %s16 = sshll.u32 [#allocation5], 4
      %s17 = int_to_ptr.vmem [resolvable:$true] %s16
      %22 = dma.hbm_to_vmem [thread:$0]  %s15, 1024, %s17, [#allocation6], 128, 128, 8
    $region5: #{tpu_custom_call.1} parent=1 // pred_fallthru
      _
    // Predicated region
    $region6: #{tpu_custom_call.1} parent=1 // pred_check
      _
    $region7: #{tpu_custom_call.1} parent=1 // pred_check_branch
      %24 = sbr.rel (0) target = $region9
    $region8: #{tpu_custom_call.1} parent=1 // pred_region
      %26 = vsyncadd [#allocation9], 0
      %s28 = sshll.u32 %s1, 4
      %s29 = int_to_ptr.hbm [resolvable:$true] %s28
      %s30 = sshll.u32 [#allocation8], 4
      %s31 = int_to_ptr.vmem [resolvable:$true] %s30
      %33 = dma.hbm_to_vmem [thread:$0]  %s29, 16, %s31, [#allocation9]
    $region9: #{tpu_custom_call.1} parent=1 // pred_fallthru
      _
    // Predicated region
    $region10: #{tpu_custom_call.1} parent=1 // pred_check
      _
    $region11: #{tpu_custom_call.1} parent=1 // pred_check_branch
      %35 = sbr.rel (0) target = $region13
    $region12: #{tpu_custom_call.1} parent=1 // pred_region
      %37 = dma.done [#allocation6], 1024
    $region13: #{tpu_custom_call.1} parent=1 // pred_fallthru
      _
    // Predicated region
    $region14: #{tpu_custom_call.1} parent=1 // pred_check
      _
    $region15: #{tpu_custom_call.1} parent=1 // pred_check_branch
      %39 = sbr.rel (0) target = $region17
    $region16: #{tpu_custom_call.1} parent=1 // pred_region
      %41 = dma.done [#allocation9], 16
    $region17: #{tpu_custom_call.1} parent=1 // pred_fallthru
      _
    %p42 = scmp.eq.s32.totalorder 0, 0
    // Predicated region
    $region18: #{tpu_custom_call.1} parent=1 // pred_check
      %p43 = pneg %p42
    $region19: #{tpu_custom_call.1} parent=1 // pred_check_branch
      %45 = sbr.rel (%p43) target = $region21
    $region20: #{tpu_custom_call.1} parent=1 // pred_region
      %vm46 = vcmask 7168
      %47 = vst.msk [vmem:[#allocation2] sm:$0xff] %vm46, -1e+30
      %48 = vst.msk [vmem:[#allocation3] sm:$0xff] %vm46, 0.0
      %49 = vst [vmem:[#allocation4] sm:$0xff] 0.0
    $region21: #{tpu_custom_call.1} parent=1 // pred_fallthru
      _
    %v50 = vld [vmem:[#allocation5] sm:$0xff]
    %v51 = vld [vmem:[#allocation5 + $0x8] sm:$0xff]
    %v52 = vld [vmem:[#allocation5 + $0x10] sm:$0xff]
    %v53 = vld [vmem:[#allocation5 + $0x18] sm:$0xff]
    %v54 = vld [vmem:[#allocation5 + $0x20] sm:$0xff]
    %v55 = vld [vmem:[#allocation5 + $0x28] sm:$0xff]
    %v56 = vld [vmem:[#allocation5 + $0x30] sm:$0xff]
    %v57 = vld [vmem:[#allocation5 + $0x38] sm:$0xff]
    %v58 = vld [vmem:[#allocation8] sm:$0x1]
    %v60 = vperm.slane %v58, 0
    %v62 = vmul.f32 %v50, %v60
    %v63 = vmul.f32 %v51, %v60
    %v64 = vmul.f32 %v52, %v60
    %v65 = vmul.f32 %v53, %v60
    %v66 = vmul.f32 %v54, %v60
    %v67 = vmul.f32 %v55, %v60
    %v68 = vmul.f32 %v56, %v60
    %v69 = vmul.f32 %v57, %v60
    %70 = vadd.xlane.f32.xlu0 %v62
    %v71 = vpop.xlane.xlu0 %70
    %72 = vadd.xlane.f32.xlu0 %v63
    %v73 = vpop.xlane.xlu0 %72
    %74 = vadd.xlane.f32.xlu0 %v64
    %v75 = vpop.xlane.xlu0 %74
    %76 = vadd.xlane.f32.xlu0 %v65
    %v77 = vpop.xlane.xlu0 %76
    %78 = vadd.xlane.f32.xlu0 %v66
    %v79 = vpop.xlane.xlu0 %78
    %80 = vadd.xlane.f32.xlu0 %v67
    %v81 = vpop.xlane.xlu0 %80
    %82 = vadd.xlane.f32.xlu0 %v68
    %v83 = vpop.xlane.xlu0 %82
    %84 = vadd.xlane.f32.xlu0 %v69
    %v85 = vpop.xlane.xlu0 %84
    %v86 = vld [vmem:[#allocation2] sm:$0xff]
    %v95 = vlaneseq
    %v96 = vand.u32 %v95, 127
    %v97 = vperm.slane %v71, %v96
    %v98 = vperm.slane %v73, %v96
    %v99 = vperm.slane %v75, %v96
    %v100 = vperm.slane %v77, %v96
    %v101 = vperm.slane %v79, %v96
    %v102 = vperm.slane %v81, %v96
    %v103 = vperm.slane %v83, %v96
    %v104 = vperm.slane %v85, %v96
    %vm105 = vcmask 1041409
    %v106 = vsel %vm105, %v98, %v97
    %vm107 = vcmask 1042434
    %v108 = vsel %vm107, %v99, %v106
    %vm109 = vcmask 1043459
    %v110 = vsel %vm109, %v100, %v108
    %vm111 = vcmask 1044484
    %v112 = vsel %vm111, %v101, %v110
    %vm113 = vcmask 1045509
    %v114 = vsel %vm113, %v102, %v112
    %vm115 = vcmask 1046534
    %v116 = vsel %vm115, %v103, %v114
    %vm117 = vcmask 1047559
    %v118 = vsel %vm117, %v104, %v116
    %vm120 = vcmask 64512
    %v121 = vsel %vm120, %v118, -inf
    %122 = vmax.xlane.f32.xlu0 %v121
    %v123 = vpop.xlane.xlu0 %122
    %v124 = vmax.f32 %v86, %v123
    %v125 = vsub.f32 %v86, %v124
    %v126 = vmul.f32 %v125, 1.442695
    %v127 = vpow.pop %v126
    %129 = vset.pattern.permute.xlu0 0
    %130 = vperm.xlu0 %129, %v124
    %v131 = vpop.permute.xlu0 %130
    %v132 = vperm.slane %v131, 0
    %v133 = vperm.slane %v131, 1
    %v134 = vperm.slane %v131, 2
    %v135 = vperm.slane %v131, 3
    %v136 = vperm.slane %v131, 4
    %v137 = vperm.slane %v131, 5
    %v138 = vperm.slane %v131, 6
    %v139 = vperm.slane %v131, 7
    %v148 = vsub.f32 %v71, %v132
    %v149 = vsub.f32 %v73, %v133
    %v150 = vsub.f32 %v75, %v134
    %v151 = vsub.f32 %v77, %v135
    %v152 = vsub.f32 %v79, %v136
    %v153 = vsub.f32 %v81, %v137
    %v154 = vsub.f32 %v83, %v138
    %v155 = vsub.f32 %v85, %v139
    %v156 = vmul.f32 %v148, 1.442695
    %v157 = vpow.pop %v156
    %v158 = vmul.f32 %v149, 1.442695
    %v159 = vpow.pop %v158
    %v160 = vmul.f32 %v150, 1.442695
    %v161 = vpow.pop %v160
    %v162 = vmul.f32 %v151, 1.442695
    %v163 = vpow.pop %v162
    %v164 = vmul.f32 %v152, 1.442695
    %v165 = vpow.pop %v164
    %v166 = vmul.f32 %v153, 1.442695
    %v167 = vpow.pop %v166
    %v168 = vmul.f32 %v154, 1.442695
    %v169 = vpow.pop %v168
    %v170 = vmul.f32 %v155, 1.442695
    %v171 = vpow.pop %v170
    %v172 = vld [vmem:[#allocation3] sm:$0xff]
    %v173 = vmul.f32 %v127, %v172
    %182 = vset.pattern.permute.xlu0 0
    %183 = vperm.xlu0 %182, %v157
    %v184 = vpop.permute.xlu0 %183
    %185 = vset.pattern.permute.xlu0 0
    %186 = vperm.xlu0 %185, %v159
    %v187 = vpop.permute.xlu0 %186
    %188 = vset.pattern.permute.xlu0 0
    %189 = vperm.xlu0 %188, %v161
    %v190 = vpop.permute.xlu0 %189
    %191 = vset.pattern.permute.xlu0 0
    %192 = vperm.xlu0 %191, %v163
    %v193 = vpop.permute.xlu0 %192
    %194 = vset.pattern.permute.xlu0 0
    %195 = vperm.xlu0 %194, %v165
    %v196 = vpop.permute.xlu0 %195
    %197 = vset.pattern.permute.xlu0 0
    %198 = vperm.xlu0 %197, %v167
    %v199 = vpop.permute.xlu0 %198
    %200 = vset.pattern.permute.xlu0 0
    %201 = vperm.xlu0 %200, %v169
    %v202 = vpop.permute.xlu0 %201
    %203 = vset.pattern.permute.xlu0 0
    %204 = vperm.xlu0 %203, %v171
    %v205 = vpop.permute.xlu0 %204
    %v206 = vperm.slane %v184, %v96
    %v207 = vperm.slane %v187, %v96
    %v208 = vperm.slane %v190, %v96
    %v209 = vperm.slane %v193, %v96
    %v210 = vperm.slane %v196, %v96
    %v211 = vperm.slane %v199, %v96
    %v212 = vperm.slane %v202, %v96
    %v213 = vperm.slane %v205, %v96
    %v214 = vsel %vm105, %v207, %v206
    %v215 = vsel %vm107, %v208, %v214
    %v216 = vsel %vm109, %v209, %v215
    %v217 = vsel %vm111, %v210, %v216
    %v218 = vsel %vm113, %v211, %v217
    %v219 = vsel %vm115, %v212, %v218
    %v220 = vsel %vm117, %v213, %v219
    %v222 = vsel %vm120, %v220, 0.0
    %223 = vadd.xlane.f32.xlu0 %v222
    %v224 = vpop.xlane.xlu0 %223
    %v225 = vadd.f32 %v173, %v224
    %vm226 = vcmask 7168
    %227 = vst.msk [vmem:[#allocation3] sm:$0xff] %vm226, %v225
    %v228 = vld [vmem:[#allocation4] sm:$0xff]
    %230 = vset.pattern.permute.xlu0 0
    %231 = vperm.xlu0 %230, %v127
    %v232 = vpop.permute.xlu0 %231
    %v234 = vmul.f32 %v232, %v228
    %v243 = vmul.f32 %v50, %v184
    %v244 = vmul.f32 %v51, %v187
    %v245 = vmul.f32 %v52, %v190
    %v246 = vmul.f32 %v53, %v193
    %v247 = vmul.f32 %v54, %v196
    %v248 = vmul.f32 %v55, %v199
    %v249 = vmul.f32 %v56, %v202
    %v250 = vmul.f32 %v57, %v205
    %v251 = vrot.slane %v243, 4
    %v252 = vadd.f32 %v243, %v251
    %v253 = vrot.slane %v252, 2
    %v254 = vadd.f32 %v252, %v253
    %v255 = vrot.slane %v254, 1
    %v256 = vadd.f32 %v254, %v255
    %v257 = vrot.slane %v244, 4
    %v258 = vadd.f32 %v244, %v257
    %v259 = vrot.slane %v258, 2
    %v260 = vadd.f32 %v258, %v259
    %v261 = vrot.slane %v260, 1
    %v262 = vadd.f32 %v260, %v261
    %v263 = vrot.slane %v245, 4
    %v264 = vadd.f32 %v245, %v263
    %v265 = vrot.slane %v264, 2
    %v266 = vadd.f32 %v264, %v265
    %v267 = vrot.slane %v266, 1
    %v268 = vadd.f32 %v266, %v267
    %v269 = vrot.slane %v246, 4
    %v270 = vadd.f32 %v246, %v269
    %v271 = vrot.slane %v270, 2
    %v272 = vadd.f32 %v270, %v271
    %v273 = vrot.slane %v272, 1
    %v274 = vadd.f32 %v272, %v273
    %v275 = vrot.slane %v247, 4
    %v276 = vadd.f32 %v247, %v275
    %v277 = vrot.slane %v276, 2
    %v278 = vadd.f32 %v276, %v277
    %v279 = vrot.slane %v278, 1
    %v280 = vadd.f32 %v278, %v279
    %v281 = vrot.slane %v248, 4
    %v282 = vadd.f32 %v248, %v281
    %v283 = vrot.slane %v282, 2
    %v284 = vadd.f32 %v282, %v283
    %v285 = vrot.slane %v284, 1
    %v286 = vadd.f32 %v284, %v285
    %v287 = vrot.slane %v249, 4
    %v288 = vadd.f32 %v249, %v287
    %v289 = vrot.slane %v288, 2
    %v290 = vadd.f32 %v288, %v289
    %v291 = vrot.slane %v290, 1
    %v292 = vadd.f32 %v290, %v291
    %v293 = vrot.slane %v250, 4
    %v294 = vadd.f32 %v250, %v293
    %v295 = vrot.slane %v294, 2
    %v296 = vadd.f32 %v294, %v295
    %v297 = vrot.slane %v296, 1
    %v298 = vadd.f32 %v296, %v297
    %v307 = vsel %vm105, %v262, %v256
    %v308 = vsel %vm107, %v268, %v307
    %v309 = vsel %vm109, %v274, %v308
    %v310 = vsel %vm111, %v280, %v309
    %v311 = vsel %vm113, %v286, %v310
    %v312 = vsel %vm115, %v292, %v311
    %v313 = vsel %vm117, %v298, %v312
    %v315 = vadd.f32 %v234, %v313
    %316 = vst [vmem:[#allocation4] sm:$0xff] %v315
    %317 = vst.msk [vmem:[#allocation2] sm:$0xff] %vm226, %v124
    // Predicated region
    $region22: #{tpu_custom_call.1} parent=1 // pred_check
      %p318 = pneg %p42
    $region23: #{tpu_custom_call.1} parent=1 // pred_check_branch
      %320 = sbr.rel (%p318) target = $region25
    $region24: #{tpu_custom_call.1} parent=1 // pred_region
      %v321 = vld [vmem:[#allocation4] sm:$0xff]
      %v322 = vld [vmem:[#allocation3] sm:$0xff]
      %324 = vset.pattern.permute.xlu0 0
      %325 = vperm.xlu0 %324, %v322
      %v326 = vpop.permute.xlu0 %325
      %v328 = vrcp.pop %v326
      %v329 = vmul.f32 %v326, %v328
      %v330 = vsub.f32 1.0, %v329
      %v331 = vmul.f32 %v328, %v330
      %v332 = vadd.f32 %v328, %v331
      %vm333 = vweird.f32 %v326
      %vm334 = vweird.f32 %v328
      %vm335 = vmor %vm333, %vm334
      %v336 = vsel %vm335, %v328, %v332
      %v337 = vand.u32 2147483647, %v326
      %vm338 = vcmp.eq.f32.partialorder %v337, 8.507059e+37
      %v339 = vand.u32 %v326, 2147483648
      %v340 = vor.u32 1.1754944e-38, %v339
      %v341 = vsel %vm338, %v340, %v336
      %v342 = vmul.f32 %v321, %v341
      %343 = vst [vmem:[#allocation10] sm:$0xff] %v342
    $region25: #{tpu_custom_call.1} parent=1 // pred_fallthru
      _
    // Predicated region
    $region26: #{tpu_custom_call.1} parent=1 // pred_check
      _
    $region27: #{tpu_custom_call.1} parent=1 // pred_check_branch
      %345 = sbr.rel (0) target = $region29
    $region28: #{tpu_custom_call.1} parent=1 // pred_region
      %347 = vsyncadd [#allocation7], 0
      %s349 = sshll.u32 [#allocation10], 4
      %s350 = int_to_ptr.vmem [resolvable:$true] %s349
      %s351 = sshll.u32 %s2, 4
      %s352 = int_to_ptr.hbm [resolvable:$true] %s351
      %354 = dma.vmem_to_hbm [thread:$0]  %s350, 128, %s352, [#allocation7]
    $region29: #{tpu_custom_call.1} parent=1 // pred_fallthru
      _
    // Predicated region
    $region30: #{tpu_custom_call.1} parent=1 // pred_check
      _
    $region31: #{tpu_custom_call.1} parent=1 // pred_check_branch
      %356 = sbr.rel (0) target = $region33
    $region32: #{tpu_custom_call.1} parent=1 // pred_region
      %358 = dma.done [#allocation7], 128
    $region33: #{tpu_custom_call.1} parent=1 // pred_fallthru
      _
    %359 = vsyncpa [#allocation6], 1
    %360 = vsyncpa [#allocation9], 1
    %361 = vsyncpa [#allocation7], 1

</llo_original>
